<compile_context>
chip_gen: v6e
topology: v6e:2x2x1
jax: 0.10.0
libtpu: 0.0.40
codegen_flags: <defaults>
</compile_context>

<pallas_src>
import functools

import jax
import jax.numpy as jnp
from jax import lax
from jax.experimental import pallas as pl
from jax.experimental.pallas import tpu as pltpu


def _cosine_codebook_kernel(x_ref, ent_ref, ind_ref, m_sc, a_sc):
    # x_ref:   (TN, D)        input row tile, streamed in its native float dtype
    # ent_ref: (D, TC)  bf16  l2-normalized codebook chunk, canonical (K, N)
    # ind_ref: (1, 1, TN) i32 lane-dense codebook indices for this row tile
    # m_sc:    (1, TN)  f32   running best score across codebook chunks
    # a_sc:    (1, TN)  i32   running argmax across codebook chunks
    j = pl.program_id(1)
    col_tile = ent_ref.shape[1]

    @pl.when(j == 0)
    def _init():
        m_sc[...] = jnp.full_like(m_sc[...], -jnp.inf)
        a_sc[...] = jnp.zeros_like(a_sc[...])

    # Scores up to a positive per-row scale: argmax_j (x/||x||)·en_j ==
    # argmax_j x·en_j, so x is not normalized.  bf16 operands, f32 accumulation.
    x_b = x_ref[...].astype(jnp.bfloat16)
    dist = lax.dot_general(
        x_b, ent_ref[...],
        dimension_numbers=(((1,), (0,)), ((), ())),
        preferred_element_type=jnp.float32,
    )  # (TN, TC) f32

    # Chunk-local max/argmax folded into the running (cross-chunk) winner.
    local_max = jnp.max(dist, axis=-1)[None, :]                        # (1, TN)
    local_arg = (jnp.argmax(dist, axis=-1).astype(jnp.int32)[None, :]
                 + j * col_tile)                                       # (1, TN)
    # Strict '>' keeps the first occurrence across chunks (jnp.argmax tie rule).
    better = local_max > m_sc[...]
    m_sc[...] = jnp.where(better, local_max, m_sc[...])
    a_sc[...] = jnp.where(better, local_arg, a_sc[...])

    @pl.when(j == pl.num_programs(1) - 1)
    def _finalize():
        ind_ref[...] = a_sc[...][None]


def _round_up(v, m):
    return ((v + m - 1) // m) * m


@functools.partial(jax.jit, static_argnames=("row_tile", "codebook_tile"))
def cosine_sim_codebook_forward(x, embed, *, row_tile=512, codebook_tile=1024):
    """Forward pass of CosineSimCodebook (eval mode, temperature == 0).

    Args:
      x:     (..., D) float array (f32 or bf16; anything else is cast to f32,
             matching the module's `x.float()`).
      embed: (C, D) codebook.
    Returns:
      quantize:  (..., D) in embed's dtype   (== embed[embed_ind])
      embed_ind: (...)    int32
    """
    assert row_tile % 128 == 0 and codebook_tile % 128 == 0
    orig_shape = x.shape
    d = orig_shape[-1]
    c, d_e = embed.shape
    assert d == d_e

    flat = x.reshape(-1, d)
    if flat.dtype != jnp.bfloat16:
        flat = flat.astype(jnp.float32)   # PyTorch x.float(); bf16 streams as-is
    n = flat.shape[0]

    # ---- tiling ------------------------------------------------------------
    row_tile = min(row_tile, _round_up(n, 128))   # don't over-tile tiny inputs
    num_row_tiles = pl.cdiv(n, row_tile)          # ragged tail: OOB-clamped DMA

    if c <= codebook_tile:
        col_tile, c_pad = c, c
    else:
        col_tile = codebook_tile
        c_pad = _round_up(c, col_tile)
    num_cb_tiles = c_pad // col_tile

    # ---- hoisted, loop-invariant codebook prep (one-time XLA ops) ----------
    e32 = embed.astype(jnp.float32)
    sumsq = jnp.sum(e32 * e32, axis=-1, keepdims=True)
    en = e32 * lax.rsqrt(jnp.maximum(sumsq, 1e-24))   # F.normalize, eps=1e-12
    en_t = en.T.astype(jnp.bfloat16)                  # (D, C) canonical (K, N)
    if c_pad != c:
        # Edge-pad with copies of the last column: a duplicate can never beat
        # the genuine column (same chunk, first-occurrence argmax; strict '>'
        # running update across chunks), so padded columns are never returned.
        en_t = jnp.pad(en_t, ((0, 0), (0, c_pad - c)), mode="edge")

    ind = pl.pallas_call(
        _cosine_codebook_kernel,
        out_shape=jax.ShapeDtypeStruct((num_row_tiles, 1, row_tile), jnp.int32),
        grid_spec=pltpu.PrefetchScalarGridSpec(
            num_scalar_prefetch=0,
            grid=(num_row_tiles, num_cb_tiles),
            in_specs=[
                pl.BlockSpec((row_tile, d), lambda i, j: (i, 0)),     # x rows
                pl.BlockSpec((d, col_tile), lambda i, j: (0, j)),     # codebook
            ],
            out_specs=pl.BlockSpec((1, 1, row_tile), lambda i, j: (i, 0, 0)),
            scratch_shapes=[
                pltpu.VMEM((1, row_tile), jnp.float32),   # running max
                pltpu.VMEM((1, row_tile), jnp.int32),     # running argmax
            ],
        ),
        compiler_params=pltpu.CompilerParams(
            dimension_semantics=("parallel", "arbitrary"),
            vmem_limit_bytes=64 * 1024 * 1024,
        ),
    )(flat, en_t)

    ids = ind.reshape(-1)[:n]
    # F.embedding(ids, embed): gather of the RAW codebook, done as an XLA
    # gather in the wrapper (perf review item 1 — no in-kernel onehot GEMM).
    quantize = jnp.take(embed, ids, axis=0).reshape(orig_shape)
    embed_ind = ids.reshape(orig_shape[:-1])
    return quantize, embed_ind


def _reference_dist(x, embed):
    """Pure-JAX f32 reference of the normalized score matrix."""
    x = x.astype(jnp.float32)
    flat = x.reshape(-1, x.shape[-1])
    xn = flat / jnp.maximum(jnp.linalg.norm(flat, axis=-1, keepdims=True), 1e-12)
    en = embed / jnp.maximum(jnp.linalg.norm(embed, axis=-1, keepdims=True), 1e-12)
    return xn @ en.T


def _check(x, embed, quantize, embed_ind):
    d = x.shape[-1]
    assert quantize.shape == x.shape and quantize.dtype == embed.dtype
    assert embed_ind.shape == x.shape[:-1] and embed_ind.dtype == jnp.int32
    ids = embed_ind.reshape(-1)
    assert bool(jnp.all((ids >= 0) & (ids < embed.shape[0])))
    # Exact F.embedding semantics.
    assert bool(jnp.array_equal(quantize.reshape(-1, d), embed[ids]))
    # Near-optimality: bf16 MXU argmax must be within bf16 rounding of the
    # f32 cosine-similarity optimum (indices may only differ on near-ties).
    dist_ref = _reference_dist(x, embed)
    picked = jnp.take_along_axis(dist_ref, ids[:, None], axis=-1)[:, 0]
    assert bool(jnp.all(picked >= dist_ref.max(axis=-1) - 2e-2))


if __name__ == "__main__":
    key = jax.random.PRNGKey(0)
    k_e1, k_x1, k_e2, k_x2 = jax.random.split(key, 4)

    # ---- config 1: module defaults (dim=32, codebook_size=64), eval mode ----
    dim, codebook_size = 32, 64
    embed_raw = jax.random.normal(k_e1, (codebook_size, dim), jnp.float32)
    embed = embed_raw / jnp.maximum(
        jnp.linalg.norm(embed_raw, axis=-1, keepdims=True), 1e-12)
    x = jax.random.normal(k_x1, (2, 8, dim), jnp.float32)

    quantize, embed_ind = cosine_sim_codebook_forward(x, embed)
    quantize, embed_ind = jax.block_until_ready((quantize, embed_ind))
    _check(x, embed, quantize, embed_ind)

    # ---- config 2: exercise ragged row tiles + streamed codebook chunks ----
    dim2, codebook_size2 = 24, 320
    embed_raw2 = jax.random.normal(k_e2, (codebook_size2, dim2), jnp.float32)
    embed2 = embed_raw2 / jnp.maximum(
        jnp.linalg.norm(embed_raw2, axis=-1, keepdims=True), 1e-12)
    x2 = jax.random.normal(k_x2, (3, 100, dim2), jnp.float32)   # n=300 (ragged)

    quantize2, embed_ind2 = cosine_sim_codebook_forward(
        x2, embed2, row_tile=128, codebook_tile=128)             # 3x3 grid
    quantize2, embed_ind2 = jax.block_until_ready((quantize2, embed_ind2))
    _check(x2, embed2, quantize2, embed_ind2)

    print("KERNEL_OK")
</pallas_src>

<mosaic_0001>
module attributes {stable_mosaic.version = 11 : i64} {
  func.func @_cosine_codebook_kernel(%arg0: i32, %arg1: i32, %arg2: memref<128x32xf32, #tpu.memory_space<vmem>>, %arg3: memref<32x64xbf16, #tpu.memory_space<vmem>>, %arg4: memref<1x1x128xi32, #tpu.memory_space<vmem>>, %arg5: memref<1x128xf32, #tpu.memory_space<vmem>>, %arg6: memref<1x128xi32, #tpu.memory_space<vmem>>) attributes {dimension_semantics = [#tpu.dimension_semantics<parallel>, #tpu.dimension_semantics<arbitrary>], iteration_bounds = array<i64: 1, 1>, scalar_prefetch = 0 : i64, scratch_operands = 2 : i64, tpu.core_type = #tpu.core_type<tc>, window_params = [{transform_indices = @transform_0, window_bounds = array<i64: 128, 32>}, {transform_indices = @transform_1, window_bounds = array<i64: 32, 64>}, {transform_indices = @transform_2, window_bounds = array<i64: 1, 1, 128>}]} {
    %c0_i32 = arith.constant 0 : i32
    %0 = arith.cmpi eq, %arg1, %c0_i32 : i32
    %1 = arith.extui %0 : i1 to i32
    %c0_i32_0 = arith.constant 0 : i32
    %2 = arith.cmpi ne, %1, %c0_i32_0 : i32
    scf.if %2 {
      %cst_17 = arith.constant 0xFF800000 : f32
      %25 = vector.broadcast %cst_17 : f32 to vector<1x128xf32>
      %c0_18 = arith.constant 0 : index
      %c0_19 = arith.constant 0 : index
      %26 = vector.load %arg5[%c0_18, %c0_19] : memref<1x128xf32, #tpu.memory_space<vmem>>, vector<1x128xf32>
      tpu.vector_store %arg5[%c0_18, %c0_19], %25 {strides = array<i32>} : memref<1x128xf32, #tpu.memory_space<vmem>>, vector<1x128xf32>,
      %c0_i32_20 = arith.constant 0 : i32
      %27 = vector.broadcast %c0_i32_20 : i32 to vector<1x128xi32>
      %c0_21 = arith.constant 0 : index
      %c0_22 = arith.constant 0 : index
      %28 = vector.load %arg6[%c0_21, %c0_22] : memref<1x128xi32, #tpu.memory_space<vmem>>, vector<1x128xi32>
      tpu.vector_store %arg6[%c0_21, %c0_22], %27 {strides = array<i32>} : memref<1x128xi32, #tpu.memory_space<vmem>>, vector<1x128xi32>,
    } else {
    }
    %c0 = arith.constant 0 : index
    %c0_1 = arith.constant 0 : index
    %3 = vector.load %arg2[%c0, %c0_1] : memref<128x32xf32, #tpu.memory_space<vmem>>, vector<128x32xf32>
    %4 = arith.truncf %3 : vector<128x32xf32> to vector<128x32xbf16>
    %c0_2 = arith.constant 0 : index
    %c0_3 = arith.constant 0 : index
    %5 = vector.load %arg3[%c0_2, %c0_3] : memref<32x64xbf16, #tpu.memory_space<vmem>>, vector<32x64xbf16>
    %cst = arith.constant dense<0.000000e+00> : vector<128x64xf32>
    %6 = tpu.matmul %4, %5, %cst {dimension_numbers = #tpu.dot_dimension_numbers<[1], [0], [0], [1], [0, 0, 1, 1], [], []>} : vector<128x32xbf16>, vector<32x64xbf16>, vector<128x64xf32> -> vector<128x64xf32>
    %cst_4 = arith.constant dense<0xFF800000> : vector<128xf32>
    %7 = vector.multi_reduction <maximumf>, %6, %cst_4 [1] : vector<128x64xf32> to vector<128xf32>
    %8 = vector.shape_cast %7 : vector<128xf32> to vector<1x128xf32>
    %9 = tpu.reduce_index %6 {axis = 1 : i32, kind = #tpu.reduction_kind<arg_max>} : vector<128x64xf32> -> vector<128xi32>
    %10 = vector.shape_cast %9 : vector<128xi32> to vector<1x128xi32>
    %c64_i32 = arith.constant 64 : i32
    %11 = arith.muli %arg1, %c64_i32 : i32
    %12 = vector.broadcast %11 : i32 to vector<1x128xi32>
    %13 = arith.addi %10, %12 : vector<1x128xi32>
    %c0_5 = arith.constant 0 : index
    %c0_6 = arith.constant 0 : index
    %14 = vector.load %arg5[%c0_5, %c0_6] : memref<1x128xf32, #tpu.memory_space<vmem>>, vector<1x128xf32>
    %15 = arith.cmpf ogt, %8, %14 : vector<1x128xf32>
    %c0_7 = arith.constant 0 : index
    %c0_8 = arith.constant 0 : index
    %16 = vector.load %arg5[%c0_7, %c0_8] : memref<1x128xf32, #tpu.memory_space<vmem>>, vector<1x128xf32>
    %17 = arith.select %15, %8, %16 : vector<1x128xi1>, vector<1x128xf32>
    %c0_9 = arith.constant 0 : index
    %c0_10 = arith.constant 0 : index
    %18 = vector.load %arg5[%c0_9, %c0_10] : memref<1x128xf32, #tpu.memory_space<vmem>>, vector<1x128xf32>
    tpu.vector_store %arg5[%c0_9, %c0_10], %17 {strides = array<i32>} : memref<1x128xf32, #tpu.memory_space<vmem>>, vector<1x128xf32>,
    %c0_11 = arith.constant 0 : index
    %c0_12 = arith.constant 0 : index
    %19 = vector.load %arg6[%c0_11, %c0_12] : memref<1x128xi32, #tpu.memory_space<vmem>>, vector<1x128xi32>
    %20 = arith.select %15, %13, %19 : vector<1x128xi1>, vector<1x128xi32>
    %c0_13 = arith.constant 0 : index
    %c0_14 = arith.constant 0 : index
    %21 = vector.load %arg6[%c0_13, %c0_14] : memref<1x128xi32, #tpu.memory_space<vmem>>, vector<1x128xi32>
    tpu.vector_store %arg6[%c0_13, %c0_14], %20 {strides = array<i32>} : memref<1x128xi32, #tpu.memory_space<vmem>>, vector<1x128xi32>,
    %c0_i32_15 = arith.constant 0 : i32
    %22 = arith.cmpi eq, %arg1, %c0_i32_15 : i32
    %23 = arith.extui %22 : i1 to i32
    %c0_i32_16 = arith.constant 0 : i32
    %24 = arith.cmpi ne, %23, %c0_i32_16 : i32
    scf.if %24 {
      %c0_17 = arith.constant 0 : index
      %c0_18 = arith.constant 0 : index
      %25 = vector.load %arg6[%c0_17, %c0_18] : memref<1x128xi32, #tpu.memory_space<vmem>>, vector<1x128xi32>
      %26 = vector.shape_cast %25 : vector<1x128xi32> to vector<1x1x128xi32>
      %c0_19 = arith.constant 0 : index
      %c0_20 = arith.constant 0 : index
      %c0_21 = arith.constant 0 : index
      %27 = vector.load %arg4[%c0_19, %c0_20, %c0_21] : memref<1x1x128xi32, #tpu.memory_space<vmem>>, vector<1x1x128xi32>
      tpu.vector_store %arg4[%c0_19, %c0_20, %c0_21], %26 {strides = array<i32>} : memref<1x1x128xi32, #tpu.memory_space<vmem>>, vector<1x1x128xi32>,
    } else {
    }
    return
  }
  func.func @transform_0(%arg0: i32, %arg1: i32) -> (i32, i32) {
    %c0_i32 = arith.constant 0 : i32
    %c0_i32_0 = arith.constant 0 : i32
    return %arg0, %c0_i32 : i32, i32
  }
  func.func @transform_1(%arg0: i32, %arg1: i32) -> (i32, i32) {
    %c0_i32 = arith.constant 0 : i32
    %c0_i32_0 = arith.constant 0 : i32
    return %c0_i32, %arg1 : i32, i32
  }
  func.func @transform_2(%arg0: i32, %arg1: i32) -> (i32, i32, i32) {
    %c0_i32 = arith.constant 0 : i32
    %c0_i32_0 = arith.constant 0 : i32
    %c0_i32_1 = arith.constant 0 : i32
    return %arg0, %c0_i32, %c0_i32_0 : i32, i32, i32
  }
}

</mosaic_0001>

<llo_original>
// kernel: cosine_sim_codebook_forward.1
$region0: #{cosine_sim_codebook_forward.1}
  #allocation0 [shape = 'u32[]', space=smem, size = 0x4, offset = 0x4, fixed_abs, tag = 'smem constant byte address 0x4 - core index']
  #allocation1 [shape = 'u32[144,128]{1,0:T(1,128)}', space=vmem, size = 0x12000, scoped, tag = 'internal scratch']
  #allocation2 [shape = 'f32[1,128]{1,0:T(1,128)}', space=vmem, size = 0x200, scoped, tag = 'scratch operand']
  #allocation3 [shape = 's32[1,128]{1,0:T(1,128)}', space=vmem, size = 0x200, scoped, tag = 'scratch operand']
  %s0 = inlined_call_operand.vmem [shape: f32[16,32], index: 0, kind: input, shape index: {}]
  %s1 = inlined_call_operand.vmem [shape: bf16[32,64], index: 1, kind: input, shape index: {}]
  %s2 = inlined_call_operand.vmem [shape: s32[1,1,128], index: 2, kind: output, shape index: {}]
  %s3 = sld [smem:[#allocation0]]
  $region26: #{cosine_sim_codebook_forward.1} parent=0
    _
  %s5 = ssub.s32 1, %s3
  %s6 = scalar_select 0, %s5, %s3
  // Predicated region
  $region2: #{cosine_sim_codebook_forward.1} parent=0 // pred_check
    _
  $region3: #{cosine_sim_codebook_forward.1} parent=0 // pred_check_branch
    %8 = sbr.rel (0) target = $region5
  $region4: #{cosine_sim_codebook_forward.1} parent=0 // pred_region
    _
  $region5: #{cosine_sim_codebook_forward.1} parent=0 // pred_fallthru
    _
  // Predicated region
  $region6: #{cosine_sim_codebook_forward.1} parent=0 // pred_check
    _
  $region7: #{cosine_sim_codebook_forward.1} parent=0 // pred_check_branch
    %10 = sbr.rel (0) target = $region9
  $region8: #{cosine_sim_codebook_forward.1} parent=0 // pred_region
    _
  $region9: #{cosine_sim_codebook_forward.1} parent=0 // pred_fallthru
    _
  %p12 = scmp.eq.s32.totalorder 0, 0
  // Predicated region
  $region10: #{cosine_sim_codebook_forward.1} parent=0 // pred_check
    %p13 = pneg %p12
  $region11: #{cosine_sim_codebook_forward.1} parent=0 // pred_check_branch
    %15 = sbr.rel (%p13) target = $region13
  $region12: #{cosine_sim_codebook_forward.1} parent=0 // pred_region
    %16 = vst [vmem:[#allocation2] sm:$0x1] -inf
    %17 = vst [vmem:[#allocation3] sm:$0x1] 0
  $region13: #{cosine_sim_codebook_forward.1} parent=0 // pred_fallthru
    _
  %v18 = vld [vmem:[%s0] sm:$0xff]
  %v19 = vld [vmem:[%s0 + $0x8] sm:$0xff]
  %v20 = vld [vmem:[%s0 + $0x10] sm:$0xff]
  %v21 = vld [vmem:[%s0 + $0x18] sm:$0xff]
  %v22 = vld [vmem:[%s0 + $0x20] sm:$0xff]
  %v23 = vld [vmem:[%s0 + $0x28] sm:$0xff]
  %v24 = vld [vmem:[%s0 + $0x30] sm:$0xff]
  %v25 = vld [vmem:[%s0 + $0x38] sm:$0xff]
  %v26 = vld [vmem:[%s0 + $0x40] sm:$0xff]
  %v27 = vld [vmem:[%s0 + $0x48] sm:$0xff]
  %v28 = vld [vmem:[%s0 + $0x50] sm:$0xff]
  %v29 = vld [vmem:[%s0 + $0x58] sm:$0xff]
  %v30 = vld [vmem:[%s0 + $0x60] sm:$0xff]
  %v31 = vld [vmem:[%s0 + $0x68] sm:$0xff]
  %v32 = vld [vmem:[%s0 + $0x70] sm:$0xff]
  %v33 = vld [vmem:[%s0 + $0x78] sm:$0xff]
  %v34 = vpack.c.bf16 %v19, %v18
  %v35 = vpack.c.bf16 %v21, %v20
  %v36 = vpack.c.bf16 %v23, %v22
  %v37 = vpack.c.bf16 %v25, %v24
  %v38 = vpack.c.bf16 %v27, %v26
  %v39 = vpack.c.bf16 %v29, %v28
  %v40 = vpack.c.bf16 %v31, %v30
  %v41 = vpack.c.bf16 %v33, %v32
  %v42 = vld [vmem:[%s1] sm:$0xf]
  %v43 = vld [vmem:[%s1 + $0x4] sm:$0xf]
  %v44 = vld [vmem:[%s1 + $0x8] sm:$0xf]
  %v45 = vld [vmem:[%s1 + $0xc] sm:$0xf]
  %v50 = vunpack.c.l.b16 %v42
  %v51 = vunpack.c.l.b16 %v43
  %v52 = vunpack.c.l.b16 %v44
  %v53 = vunpack.c.l.b16 %v45
  %v54 = vpack.c.b16 %v51, %v50
  %v55 = vpack.c.b16 %v53, %v52
  %vm58 = vcmask 261120
  %v60 = vsel %vm58, %v34, 0
  %v63 = vsel %vm58, %v35, 0
  %v66 = vsel %vm58, %v36, 0
  %v69 = vsel %vm58, %v37, 0
  %v72 = vsel %vm58, %v38, 0
  %v75 = vsel %vm58, %v39, 0
  %v78 = vsel %vm58, %v40, 0
  %v81 = vsel %vm58, %v41, 0
  %83 = vmatprep.subr.bf16.mxu0 0
  %84 = vmatpush1.bf16.msra.mxu0 0
  %85 = vmatprep.subr.bf16.mxu0 0
  %86 = vmatpush1.bf16.msra.mxu0 0
  %87 = vmatprep.subr.bf16.mxu0 0
  %88 = vmatpush1.bf16.msra.mxu0 0
  %89 = vmatprep.subr.bf16.mxu0 0
  %90 = vmatpush1.bf16.msra.mxu0 0
  %91 = vmatprep.subr.bf16.mxu0 0
  %92 = vmatpush1.bf16.msra.mxu0 0
  %93 = vmatprep.subr.bf16.mxu0 0
  %94 = vmatpush1.bf16.msra.mxu0 0
  %95 = vmatprep.subr.bf16.mxu0 0
  %96 = vmatpush1.bf16.msra.mxu0 %v55
  %97 = vmatprep.subr.bf16.mxu0 0
  %98 = vmatpush1.bf16.msra.mxu0 %v54
  %99 = vmatprep.subr.bf16.mxu0 0
  %100 = vmatpush2.bf16.msra.mxu0 0
  %101 = vmatprep.subr.bf16.mxu0 0
  %102 = vmatpush2.bf16.msra.mxu0 0
  %103 = vmatprep.subr.bf16.mxu0 0
  %104 = vmatpush2.bf16.msra.mxu0 0
  %105 = vmatprep.subr.bf16.mxu0 0
  %106 = vmatpush2.bf16.msra.mxu0 0
  %107 = vmatprep.subr.bf16.mxu0 0
  %108 = vmatpush2.bf16.msra.mxu0 0
  %109 = vmatprep.subr.bf16.mxu0 0
  %110 = vmatpush2.bf16.msra.mxu0 0
  %111 = vmatprep.subr.bf16.mxu0 0
  %112 = vmatpush2.bf16.msra.mxu0 0
  %113 = vmatprep.subr.bf16.mxu0 0
  %114 = vmatpush2.bf16.msra.mxu0 0
  %115 = vmatprep.mubr.bf16.mxu0 0
  %116 = vmatmul.mubr.bf16.gmra.mxu0 %v60
  %v117 = vpop.f32.mrf.mxu0
  %v118 = vadd.f32 0.0, %v117
  %v119 = vpop.f32.mrf.mxu0
  %v120 = vpop.f32.mrf.mxu0
  %v121 = vadd.f32 0.0, %v120
  %v122 = vpop.f32.mrf.mxu0
  %123 = vmatprep.mubr.bf16.mxu0 0
  %124 = vmatmul.mubr.bf16.gmra.mxu0 %v63
  %v125 = vpop.f32.mrf.mxu0
  %v126 = vadd.f32 0.0, %v125
  %v127 = vpop.f32.mrf.mxu0
  %v128 = vpop.f32.mrf.mxu0
  %v129 = vadd.f32 0.0, %v128
  %v130 = vpop.f32.mrf.mxu0
  %131 = vmatprep.mubr.bf16.mxu0 0
  %132 = vmatmul.mubr.bf16.gmra.mxu0 %v66
  %v133 = vpop.f32.mrf.mxu0
  %v134 = vadd.f32 0.0, %v133
  %v135 = vpop.f32.mrf.mxu0
  %v136 = vpop.f32.mrf.mxu0
  %v137 = vadd.f32 0.0, %v136
  %v138 = vpop.f32.mrf.mxu0
  %139 = vmatprep.mubr.bf16.mxu0 0
  %140 = vmatmul.mubr.bf16.gmra.mxu0 %v69
  %v141 = vpop.f32.mrf.mxu0
  %v142 = vadd.f32 0.0, %v141
  %v143 = vpop.f32.mrf.mxu0
  %v144 = vpop.f32.mrf.mxu0
  %v145 = vadd.f32 0.0, %v144
  %v146 = vpop.f32.mrf.mxu0
  %147 = vmatprep.mubr.bf16.mxu0 0
  %148 = vmatmul.mubr.bf16.gmra.mxu0 %v72
  %v149 = vpop.f32.mrf.mxu0
  %v150 = vadd.f32 0.0, %v149
  %v151 = vpop.f32.mrf.mxu0
  %v152 = vpop.f32.mrf.mxu0
  %v153 = vadd.f32 0.0, %v152
  %v154 = vpop.f32.mrf.mxu0
  %155 = vmatprep.mubr.bf16.mxu0 0
  %156 = vmatmul.mubr.bf16.gmra.mxu0 %v75
  %v157 = vpop.f32.mrf.mxu0
  %v158 = vadd.f32 0.0, %v157
  %v159 = vpop.f32.mrf.mxu0
  %v160 = vpop.f32.mrf.mxu0
  %v161 = vadd.f32 0.0, %v160
  %v162 = vpop.f32.mrf.mxu0
  %163 = vmatprep.mubr.bf16.mxu0 0
  %164 = vmatmul.mubr.bf16.gmra.mxu0 %v78
  %v165 = vpop.f32.mrf.mxu0
  %v166 = vadd.f32 0.0, %v165
  %v167 = vpop.f32.mrf.mxu0
  %v168 = vpop.f32.mrf.mxu0
  %v169 = vadd.f32 0.0, %v168
  %v170 = vpop.f32.mrf.mxu0
  %171 = vmatprep.mubr.bf16.mxu0 0
  %172 = vmatmul.mubr.bf16.gmra.mxu0 %v81
  %v173 = vpop.f32.mrf.mxu0
  %v174 = vadd.f32 0.0, %v173
  %v175 = vpop.f32.mrf.mxu0
  %v176 = vpop.f32.mrf.mxu0
  %v177 = vadd.f32 0.0, %v176
  %v178 = vpop.f32.mrf.mxu0
  %179 = vdwg.mxu0
  %vm180 = vcmask 523264
  %v181 = vsel %vm180, %v118, -inf
  %182 = vmax.xlane.f32.xlu0 %v181
  %v183 = vpop.xlane.xlu0 %182
  %v184 = vsel %vm180, %v121, -inf
  %185 = vmax.xlane.f32.xlu0 %v184
  %v186 = vpop.xlane.xlu0 %185
  %v187 = vsel %vm180, %v126, -inf
  %188 = vmax.xlane.f32.xlu0 %v187
  %v189 = vpop.xlane.xlu0 %188
  %v190 = vsel %vm180, %v129, -inf
  %191 = vmax.xlane.f32.xlu0 %v190
  %v192 = vpop.xlane.xlu0 %191
  %v193 = vsel %vm180, %v134, -inf
  %194 = vmax.xlane.f32.xlu0 %v193
  %v195 = vpop.xlane.xlu0 %194
  %v196 = vsel %vm180, %v137, -inf
  %197 = vmax.xlane.f32.xlu0 %v196
  %v198 = vpop.xlane.xlu0 %197
  %v199 = vsel %vm180, %v142, -inf
  %200 = vmax.xlane.f32.xlu0 %v199
  %v201 = vpop.xlane.xlu0 %200
  %v202 = vsel %vm180, %v145, -inf
  %203 = vmax.xlane.f32.xlu0 %v202
  %v204 = vpop.xlane.xlu0 %203
  %v205 = vsel %vm180, %v150, -inf
  %206 = vmax.xlane.f32.xlu0 %v205
  %v207 = vpop.xlane.xlu0 %206
  %v208 = vsel %vm180, %v153, -inf
  %209 = vmax.xlane.f32.xlu0 %v208
  %v210 = vpop.xlane.xlu0 %209
  %v211 = vsel %vm180, %v158, -inf
  %212 = vmax.xlane.f32.xlu0 %v211
  %v213 = vpop.xlane.xlu0 %212
  %v214 = vsel %vm180, %v161, -inf
  %215 = vmax.xlane.f32.xlu0 %v214
  %v216 = vpop.xlane.xlu0 %215
  %v217 = vsel %vm180, %v166, -inf
  %218 = vmax.xlane.f32.xlu0 %v217
  %v219 = vpop.xlane.xlu0 %218
  %v220 = vsel %vm180, %v169, -inf
  %221 = vmax.xlane.f32.xlu0 %v220
  %v222 = vpop.xlane.xlu0 %221
  %v223 = vsel %vm180, %v174, -inf
  %224 = vmax.xlane.f32.xlu0 %v223
  %v225 = vpop.xlane.xlu0 %224
  %v226 = vsel %vm180, %v177, -inf
  %227 = vmax.xlane.f32.xlu0 %v226
  %v228 = vpop.xlane.xlu0 %227
  %229 = vmax.index.xlane.f32.xlu0 %v181
  %v230 = vpop.xlane.xlu0 %229
  %231 = vmax.index.xlane.f32.xlu0 %v184
  %v232 = vpop.xlane.xlu0 %231
  %233 = vmax.index.xlane.f32.xlu0 %v187
  %v234 = vpop.xlane.xlu0 %233
  %235 = vmax.index.xlane.f32.xlu0 %v190
  %v236 = vpop.xlane.xlu0 %235
  %237 = vmax.index.xlane.f32.xlu0 %v193
  %v238 = vpop.xlane.xlu0 %237
  %239 = vmax.index.xlane.f32.xlu0 %v196
  %v240 = vpop.xlane.xlu0 %239
  %241 = vmax.index.xlane.f32.xlu0 %v199
  %v242 = vpop.xlane.xlu0 %241
  %243 = vmax.index.xlane.f32.xlu0 %v202
  %v244 = vpop.xlane.xlu0 %243
  %245 = vmax.index.xlane.f32.xlu0 %v205
  %v246 = vpop.xlane.xlu0 %245
  %247 = vmax.index.xlane.f32.xlu0 %v208
  %v248 = vpop.xlane.xlu0 %247
  %249 = vmax.index.xlane.f32.xlu0 %v211
  %v250 = vpop.xlane.xlu0 %249
  %251 = vmax.index.xlane.f32.xlu0 %v214
  %v252 = vpop.xlane.xlu0 %251
  %253 = vmax.index.xlane.f32.xlu0 %v217
  %v254 = vpop.xlane.xlu0 %253
  %255 = vmax.index.xlane.f32.xlu0 %v220
  %v256 = vpop.xlane.xlu0 %255
  %257 = vmax.index.xlane.f32.xlu0 %v223
  %v258 = vpop.xlane.xlu0 %257
  %259 = vmax.index.xlane.f32.xlu0 %v226
  %v260 = vpop.xlane.xlu0 %259
  %s261 = smul.u32 0, 64
  %v262 = vstv %s261
  %v263 = vadd.s32 %v230, %v262
  %v264 = vadd.s32 %v232, %v262
  %v265 = vadd.s32 %v234, %v262
  %v266 = vadd.s32 %v236, %v262
  %v267 = vadd.s32 %v238, %v262
  %v268 = vadd.s32 %v240, %v262
  %v269 = vadd.s32 %v242, %v262
  %v270 = vadd.s32 %v244, %v262
  %v271 = vadd.s32 %v246, %v262
  %v272 = vadd.s32 %v248, %v262
  %v273 = vadd.s32 %v250, %v262
  %v274 = vadd.s32 %v252, %v262
  %v275 = vadd.s32 %v254, %v262
  %v276 = vadd.s32 %v256, %v262
  %v277 = vadd.s32 %v258, %v262
  %v278 = vadd.s32 %v260, %v262
  %v279 = vld [vmem:[#allocation2] sm:$0x1]
  %v281 = vlaneseq
  %v282 = vshrl.u32 %v281, 7
  %v283 = vsub.s32 0, %v282
  %v284 = vrot.slane %v279, %v283
  %286 = vbcast.lane.b32.xlu0 %v284, 256
  %v287 = vpop.permute.xlu0 %286
  %s289 = sor.u32 256, 8
  %290 = vbcast.lane.b32.xlu0 %v284, %s289
  %v291 = vpop.permute.xlu0 %290
  %s293 = sor.u32 256, 16
  %294 = vbcast.lane.b32.xlu0 %v284, %s293
  %v295 = vpop.permute.xlu0 %294
  %s297 = sor.u32 256, 24
  %298 = vbcast.lane.b32.xlu0 %v284, %s297
  %v299 = vpop.permute.xlu0 %298
  %s301 = sor.u32 256, 32
  %302 = vbcast.lane.b32.xlu0 %v284, %s301
  %v303 = vpop.permute.xlu0 %302
  %s305 = sor.u32 256, 40
  %306 = vbcast.lane.b32.xlu0 %v284, %s305
  %v307 = vpop.permute.xlu0 %306
  %s309 = sor.u32 256, 48
  %310 = vbcast.lane.b32.xlu0 %v284, %s309
  %v311 = vpop.permute.xlu0 %310
  %s313 = sor.u32 256, 56
  %314 = vbcast.lane.b32.xlu0 %v284, %s313
  %v315 = vpop.permute.xlu0 %314
  %s317 = sor.u32 256, 64
  %318 = vbcast.lane.b32.xlu0 %v284, %s317
  %v319 = vpop.permute.xlu0 %318
  %s321 = sor.u32 256, 72
  %322 = vbcast.lane.b32.xlu0 %v284, %s321
  %v323 = vpop.permute.xlu0 %322
  %s325 = sor.u32 256, 80
  %326 = vbcast.lane.b32.xlu0 %v284, %s325
  %v327 = vpop.permute.xlu0 %326
  %s329 = sor.u32 256, 88
  %330 = vbcast.lane.b32.xlu0 %v284, %s329
  %v331 = vpop.permute.xlu0 %330
  %s333 = sor.u32 256, 96
  %334 = vbcast.lane.b32.xlu0 %v284, %s333
  %v335 = vpop.permute.xlu0 %334
  %s337 = sor.u32 256, 104
  %338 = vbcast.lane.b32.xlu0 %v284, %s337
  %v339 = vpop.permute.xlu0 %338
  %s341 = sor.u32 256, 112
  %342 = vbcast.lane.b32.xlu0 %v284, %s341
  %v343 = vpop.permute.xlu0 %342
  %s345 = sor.u32 256, 120
  %346 = vbcast.lane.b32.xlu0 %v284, %s345
  %v347 = vpop.permute.xlu0 %346
  %vm364 = vcmp.gt.f32.partialorder %v183, %v287
  %vm365 = vcmp.gt.f32.partialorder %v186, %v291
  %vm366 = vcmp.gt.f32.partialorder %v189, %v295
  %vm367 = vcmp.gt.f32.partialorder %v192, %v299
  %vm368 = vcmp.gt.f32.partialorder %v195, %v303
  %vm369 = vcmp.gt.f32.partialorder %v198, %v307
  %vm370 = vcmp.gt.f32.partialorder %v201, %v311
  %vm371 = vcmp.gt.f32.partialorder %v204, %v315
  %vm372 = vcmp.gt.f32.partialorder %v207, %v319
  %vm373 = vcmp.gt.f32.partialorder %v210, %v323
  %vm374 = vcmp.gt.f32.partialorder %v213, %v327
  %vm375 = vcmp.gt.f32.partialorder %v216, %v331
  %vm376 = vcmp.gt.f32.partialorder %v219, %v335
  %vm377 = vcmp.gt.f32.partialorder %v222, %v339
  %vm378 = vcmp.gt.f32.partialorder %v225, %v343
  %vm379 = vcmp.gt.f32.partialorder %v228, %v347
  %v380 = vsel %vm364, %v183, %v287
  %v381 = vsel %vm365, %v186, %v291
  %v382 = vsel %vm366, %v189, %v295
  %v383 = vsel %vm367, %v192, %v299
  %v384 = vsel %vm368, %v195, %v303
  %v385 = vsel %vm369, %v198, %v307
  %v386 = vsel %vm370, %v201, %v311
  %v387 = vsel %vm371, %v204, %v315
  %v388 = vsel %vm372, %v207, %v319
  %v389 = vsel %vm373, %v210, %v323
  %v390 = vsel %vm374, %v213, %v327
  %v391 = vsel %vm375, %v216, %v331
  %v392 = vsel %vm376, %v219, %v335
  %v393 = vsel %vm377, %v222, %v339
  %v394 = vsel %vm378, %v225, %v343
  %v395 = vsel %vm379, %v228, %v347
  %412 = vset.pattern.permute.xlu0 0
  %413 = vperm.xlu0 %412, %v380
  %v414 = vpop.permute.xlu0 %413
  %415 = vset.pattern.permute.xlu0 0
  %416 = vperm.xlu0 %415, %v381
  %v417 = vpop.permute.xlu0 %416
  %418 = vset.pattern.permute.xlu0 0
  %419 = vperm.xlu0 %418, %v382
  %v420 = vpop.permute.xlu0 %419
  %421 = vset.pattern.permute.xlu0 0
  %422 = vperm.xlu0 %421, %v383
  %v423 = vpop.permute.xlu0 %422
  %424 = vset.pattern.permute.xlu0 0
  %425 = vperm.xlu0 %424, %v384
  %v426 = vpop.permute.xlu0 %425
  %427 = vset.pattern.permute.xlu0 0
  %428 = vperm.xlu0 %427, %v385
  %v429 = vpop.permute.xlu0 %428
  %430 = vset.pattern.permute.xlu0 0
  %431 = vperm.xlu0 %430, %v386
  %v432 = vpop.permute.xlu0 %431
  %433 = vset.pattern.permute.xlu0 0
  %434 = vperm.xlu0 %433, %v387
  %v435 = vpop.permute.xlu0 %434
  %436 = vset.pattern.permute.xlu0 0
  %437 = vperm.xlu0 %436, %v388
  %v438 = vpop.permute.xlu0 %437
  %439 = vset.pattern.permute.xlu0 0
  %440 = vperm.xlu0 %439, %v389
  %v441 = vpop.permute.xlu0 %440
  %442 = vset.pattern.permute.xlu0 0
  %443 = vperm.xlu0 %442, %v390
  %v444 = vpop.permute.xlu0 %443
  %445 = vset.pattern.permute.xlu0 0
  %446 = vperm.xlu0 %445, %v391
  %v447 = vpop.permute.xlu0 %446
  %448 = vset.pattern.permute.xlu0 0
  %449 = vperm.xlu0 %448, %v392
  %v450 = vpop.permute.xlu0 %449
  %451 = vset.pattern.permute.xlu0 0
  %452 = vperm.xlu0 %451, %v393
  %v453 = vpop.permute.xlu0 %452
  %454 = vset.pattern.permute.xlu0 0
  %455 = vperm.xlu0 %454, %v394
  %v456 = vpop.permute.xlu0 %455
  %457 = vset.pattern.permute.xlu0 0
  %458 = vperm.xlu0 %457, %v395
  %v459 = vpop.permute.xlu0 %458
  %v460 = vlaneseq
  %v461 = vand.u32 %v460, 127
  %v462 = vlaneseq
  %v463 = vshrl.u32 %v462, 7
  %v464 = vsub.s32 %v461, %v463
  %v465 = vrot.slane %v414, %v464
  %v466 = vadd.s32 %v461, 4294967288
  %v467 = vlaneseq
  %v468 = vshrl.u32 %v467, 7
  %v469 = vsub.s32 %v466, %v468
  %v470 = vrot.slane %v417, %v469
  %vm471 = vcmask 130112
  %v472 = vsel %vm471, %v470, %v465
  %v473 = vadd.s32 %v461, 4294967280
  %v474 = vlaneseq
  %v475 = vshrl.u32 %v474, 7
  %v476 = vsub.s32 %v473, %v475
  %v477 = vrot.slane %v420, %v476
  %vm478 = vcmask 195712
  %v479 = vsel %vm478, %v477, %v472
  %v480 = vadd.s32 %v461, 4294967272
  %v481 = vlaneseq
  %v482 = vshrl.u32 %v481, 7
  %v483 = vsub.s32 %v480, %v482
  %v484 = vrot.slane %v423, %v483
  %vm485 = vcmask 261312
  %v486 = vsel %vm485, %v484, %v479
  %v487 = vadd.s32 %v461, 4294967264
  %v488 = vlaneseq
  %v489 = vshrl.u32 %v488, 7
  %v490 = vsub.s32 %v487, %v489
  %v491 = vrot.slane %v426, %v490
  %vm492 = vcmask 326912
  %v493 = vsel %vm492, %v491, %v486
  %v494 = vadd.s32 %v461, 4294967256
  %v495 = vlaneseq
  %v496 = vshrl.u32 %v495, 7
  %v497 = vsub.s32 %v494, %v496
  %v498 = vrot.slane %v429, %v497
  %vm499 = vcmask 392512
  %v500 = vsel %vm499, %v498, %v493
  %v501 = vadd.s32 %v461, 4294967248
  %v502 = vlaneseq
  %v503 = vshrl.u32 %v502, 7
  %v504 = vsub.s32 %v501, %v503
  %v505 = vrot.slane %v432, %v504
  %vm506 = vcmask 458112
  %v507 = vsel %vm506, %v505, %v500
  %v508 = vadd.s32 %v461, 4294967240
  %v509 = vlaneseq
  %v510 = vshrl.u32 %v509, 7
  %v511 = vsub.s32 %v508, %v510
  %v512 = vrot.slane %v435, %v511
  %vm513 = vcmask 523712
  %v514 = vsel %vm513, %v512, %v507
  %v515 = vadd.s32 %v461, 4294967232
  %v516 = vlaneseq
  %v517 = vshrl.u32 %v516, 7
  %v518 = vsub.s32 %v515, %v517
  %v519 = vrot.slane %v438, %v518
  %vm520 = vcmask 589312
  %v521 = vsel %vm520, %v519, %v514
  %v522 = vadd.s32 %v461, 4294967224
  %v523 = vlaneseq
  %v524 = vshrl.u32 %v523, 7
  %v525 = vsub.s32 %v522, %v524
  %v526 = vrot.slane %v441, %v525
  %vm527 = vcmask 654912
  %v528 = vsel %vm527, %v526, %v521
  %v529 = vadd.s32 %v461, 4294967216
  %v530 = vlaneseq
  %v531 = vshrl.u32 %v530, 7
  %v532 = vsub.s32 %v529, %v531
  %v533 = vrot.slane %v444, %v532
  %vm534 = vcmask 720512
  %v535 = vsel %vm534, %v533, %v528
  %v536 = vadd.s32 %v461, 4294967208
  %v537 = vlaneseq
  %v538 = vshrl.u32 %v537, 7
  %v539 = vsub.s32 %v536, %v538
  %v540 = vrot.slane %v447, %v539
  %vm541 = vcmask 786112
  %v542 = vsel %vm541, %v540, %v535
  %v543 = vadd.s32 %v461, 4294967200
  %v544 = vlaneseq
  %v545 = vshrl.u32 %v544, 7
  %v546 = vsub.s32 %v543, %v545
  %v547 = vrot.slane %v450, %v546
  %vm548 = vcmask 851712
  %v549 = vsel %vm548, %v547, %v542
  %v550 = vadd.s32 %v461, 4294967192
  %v551 = vlaneseq
  %v552 = vshrl.u32 %v551, 7
  %v553 = vsub.s32 %v550, %v552
  %v554 = vrot.slane %v453, %v553
  %vm555 = vcmask 917312
  %v556 = vsel %vm555, %v554, %v549
  %v557 = vadd.s32 %v461, 4294967184
  %v558 = vlaneseq
  %v559 = vshrl.u32 %v558, 7
  %v560 = vsub.s32 %v557, %v559
  %v561 = vrot.slane %v456, %v560
  %vm562 = vcmask 982912
  %v563 = vsel %vm562, %v561, %v556
  %v564 = vadd.s32 %v461, 4294967176
  %v565 = vlaneseq
  %v566 = vshrl.u32 %v565, 7
  %v567 = vsub.s32 %v564, %v566
  %v568 = vrot.slane %v459, %v567
  %vm569 = vcmask 1048512
  %v570 = vsel %vm569, %v568, %v563
  %572 = vst [vmem:[#allocation2] sm:$0x1] %v570
  %v573 = vld [vmem:[#allocation3] sm:$0x1]
  %v574 = vlaneseq
  %v575 = vshrl.u32 %v574, 7
  %v576 = vsub.s32 0, %v575
  %v577 = vrot.slane %v573, %v576
  %579 = vbcast.lane.b32.xlu0 %v577, 256
  %v580 = vpop.permute.xlu0 %579
  %s582 = sor.u32 256, 8
  %583 = vbcast.lane.b32.xlu0 %v577, %s582
  %v584 = vpop.permute.xlu0 %583
  %s586 = sor.u32 256, 16
  %587 = vbcast.lane.b32.xlu0 %v577, %s586
  %v588 = vpop.permute.xlu0 %587
  %s590 = sor.u32 256, 24
  %591 = vbcast.lane.b32.xlu0 %v577, %s590
  %v592 = vpop.permute.xlu0 %591
  %s594 = sor.u32 256, 32
  %595 = vbcast.lane.b32.xlu0 %v577, %s594
  %v596 = vpop.permute.xlu0 %595
  %s598 = sor.u32 256, 40
  %599 = vbcast.lane.b32.xlu0 %v577, %s598
  %v600 = vpop.permute.xlu0 %599
  %s602 = sor.u32 256, 48
  %603 = vbcast.lane.b32.xlu0 %v577, %s602
  %v604 = vpop.permute.xlu0 %603
  %s606 = sor.u32 256, 56
  %607 = vbcast.lane.b32.xlu0 %v577, %s606
  %v608 = vpop.permute.xlu0 %607
  %s610 = sor.u32 256, 64
  %611 = vbcast.lane.b32.xlu0 %v577, %s610
  %v612 = vpop.permute.xlu0 %611
  %s614 = sor.u32 256, 72
  %615 = vbcast.lane.b32.xlu0 %v577, %s614
  %v616 = vpop.permute.xlu0 %615
  %s618 = sor.u32 256, 80
  %619 = vbcast.lane.b32.xlu0 %v577, %s618
  %v620 = vpop.permute.xlu0 %619
  %s622 = sor.u32 256, 88
  %623 = vbcast.lane.b32.xlu0 %v577, %s622
  %v624 = vpop.permute.xlu0 %623
  %s626 = sor.u32 256, 96
  %627 = vbcast.lane.b32.xlu0 %v577, %s626
  %v628 = vpop.permute.xlu0 %627
  %s630 = sor.u32 256, 104
  %631 = vbcast.lane.b32.xlu0 %v577, %s630
  %v632 = vpop.permute.xlu0 %631
  %s634 = sor.u32 256, 112
  %635 = vbcast.lane.b32.xlu0 %v577, %s634
  %v636 = vpop.permute.xlu0 %635
  %s638 = sor.u32 256, 120
  %639 = vbcast.lane.b32.xlu0 %v577, %s638
  %v640 = vpop.permute.xlu0 %639
  %v641 = vsel %vm364, %v263, %v580
  %v642 = vsel %vm365, %v264, %v584
  %v643 = vsel %vm366, %v265, %v588
  %v644 = vsel %vm367, %v266, %v592
  %v645 = vsel %vm368, %v267, %v596
  %v646 = vsel %vm369, %v268, %v600
  %v647 = vsel %vm370, %v269, %v604
  %v648 = vsel %vm371, %v270, %v608
  %v649 = vsel %vm372, %v271, %v612
  %v650 = vsel %vm373, %v272, %v616
  %v651 = vsel %vm374, %v273, %v620
  %v652 = vsel %vm375, %v274, %v624
  %v653 = vsel %vm376, %v275, %v628
  %v654 = vsel %vm377, %v276, %v632
  %v655 = vsel %vm378, %v277, %v636
  %v656 = vsel %vm379, %v278, %v640
  %657 = vset.pattern.permute.xlu0 0
  %658 = vperm.xlu0 %657, %v641
  %v659 = vpop.permute.xlu0 %658
  %660 = vset.pattern.permute.xlu0 0
  %661 = vperm.xlu0 %660, %v642
  %v662 = vpop.permute.xlu0 %661
  %663 = vset.pattern.permute.xlu0 0
  %664 = vperm.xlu0 %663, %v643
  %v665 = vpop.permute.xlu0 %664
  %666 = vset.pattern.permute.xlu0 0
  %667 = vperm.xlu0 %666, %v644
  %v668 = vpop.permute.xlu0 %667
  %669 = vset.pattern.permute.xlu0 0
  %670 = vperm.xlu0 %669, %v645
  %v671 = vpop.permute.xlu0 %670
  %672 = vset.pattern.permute.xlu0 0
  %673 = vperm.xlu0 %672, %v646
  %v674 = vpop.permute.xlu0 %673
  %675 = vset.pattern.permute.xlu0 0
  %676 = vperm.xlu0 %675, %v647
  %v677 = vpop.permute.xlu0 %676
  %678 = vset.pattern.permute.xlu0 0
  %679 = vperm.xlu0 %678, %v648
  %v680 = vpop.permute.xlu0 %679
  %681 = vset.pattern.permute.xlu0 0
  %682 = vperm.xlu0 %681, %v649
  %v683 = vpop.permute.xlu0 %682
  %684 = vset.pattern.permute.xlu0 0
  %685 = vperm.xlu0 %684, %v650
  %v686 = vpop.permute.xlu0 %685
  %687 = vset.pattern.permute.xlu0 0
  %688 = vperm.xlu0 %687, %v651
  %v689 = vpop.permute.xlu0 %688
  %690 = vset.pattern.permute.xlu0 0
  %691 = vperm.xlu0 %690, %v652
  %v692 = vpop.permute.xlu0 %691
  %693 = vset.pattern.permute.xlu0 0
  %694 = vperm.xlu0 %693, %v653
  %v695 = vpop.permute.xlu0 %694
  %696 = vset.pattern.permute.xlu0 0
  %697 = vperm.xlu0 %696, %v654
  %v698 = vpop.permute.xlu0 %697
  %699 = vset.pattern.permute.xlu0 0
  %700 = vperm.xlu0 %699, %v655
  %v701 = vpop.permute.xlu0 %700
  %702 = vset.pattern.permute.xlu0 0
  %703 = vperm.xlu0 %702, %v656
  %v704 = vpop.permute.xlu0 %703
  %v705 = vlaneseq
  %v706 = vshrl.u32 %v705, 7
  %v707 = vsub.s32 %v461, %v706
  %v708 = vrot.slane %v659, %v707
  %v709 = vlaneseq
  %v710 = vshrl.u32 %v709, 7
  %v711 = vsub.s32 %v466, %v710
  %v712 = vrot.slane %v662, %v711
  %v713 = vsel %vm471, %v712, %v708
  %v714 = vlaneseq
  %v715 = vshrl.u32 %v714, 7
  %v716 = vsub.s32 %v473, %v715
  %v717 = vrot.slane %v665, %v716
  %v718 = vsel %vm478, %v717, %v713
  %v719 = vlaneseq
  %v720 = vshrl.u32 %v719, 7
  %v721 = vsub.s32 %v480, %v720
  %v722 = vrot.slane %v668, %v721
  %v723 = vsel %vm485, %v722, %v718
  %v724 = vlaneseq
  %v725 = vshrl.u32 %v724, 7
  %v726 = vsub.s32 %v487, %v725
  %v727 = vrot.slane %v671, %v726
  %v728 = vsel %vm492, %v727, %v723
  %v729 = vlaneseq
  %v730 = vshrl.u32 %v729, 7
  %v731 = vsub.s32 %v494, %v730
  %v732 = vrot.slane %v674, %v731
  %v733 = vsel %vm499, %v732, %v728
  %v734 = vlaneseq
  %v735 = vshrl.u32 %v734, 7
  %v736 = vsub.s32 %v501, %v735
  %v737 = vrot.slane %v677, %v736
  %v738 = vsel %vm506, %v737, %v733
  %v739 = vlaneseq
  %v740 = vshrl.u32 %v739, 7
  %v741 = vsub.s32 %v508, %v740
  %v742 = vrot.slane %v680, %v741
  %v743 = vsel %vm513, %v742, %v738
  %v744 = vlaneseq
  %v745 = vshrl.u32 %v744, 7
  %v746 = vsub.s32 %v515, %v745
  %v747 = vrot.slane %v683, %v746
  %v748 = vsel %vm520, %v747, %v743
  %v749 = vlaneseq
  %v750 = vshrl.u32 %v749, 7
  %v751 = vsub.s32 %v522, %v750
  %v752 = vrot.slane %v686, %v751
  %v753 = vsel %vm527, %v752, %v748
  %v754 = vlaneseq
  %v755 = vshrl.u32 %v754, 7
  %v756 = vsub.s32 %v529, %v755
  %v757 = vrot.slane %v689, %v756
  %v758 = vsel %vm534, %v757, %v753
  %v759 = vlaneseq
  %v760 = vshrl.u32 %v759, 7
  %v761 = vsub.s32 %v536, %v760
  %v762 = vrot.slane %v692, %v761
  %v763 = vsel %vm541, %v762, %v758
  %v764 = vlaneseq
  %v765 = vshrl.u32 %v764, 7
  %v766 = vsub.s32 %v543, %v765
  %v767 = vrot.slane %v695, %v766
  %v768 = vsel %vm548, %v767, %v763
  %v769 = vlaneseq
  %v770 = vshrl.u32 %v769, 7
  %v771 = vsub.s32 %v550, %v770
  %v772 = vrot.slane %v698, %v771
  %v773 = vsel %vm555, %v772, %v768
  %v774 = vlaneseq
  %v775 = vshrl.u32 %v774, 7
  %v776 = vsub.s32 %v557, %v775
  %v777 = vrot.slane %v701, %v776
  %v778 = vsel %vm562, %v777, %v773
  %v779 = vlaneseq
  %v780 = vshrl.u32 %v779, 7
  %v781 = vsub.s32 %v564, %v780
  %v782 = vrot.slane %v704, %v781
  %v783 = vsel %vm569, %v782, %v778
  %784 = vst [vmem:[#allocation3] sm:$0x1] %v783
  // Predicated region
  $region14: #{cosine_sim_codebook_forward.1} parent=0 // pred_check
    %p785 = pneg %p12
  $region15: #{cosine_sim_codebook_forward.1} parent=0 // pred_check_branch
    %787 = sbr.rel (%p785) target = $region17
  $region16: #{cosine_sim_codebook_forward.1} parent=0 // pred_region
    %v788 = vld [vmem:[#allocation3] sm:$0x1]
    %789 = vst [vmem:[%s2] sm:$0x1] %v788
  $region17: #{cosine_sim_codebook_forward.1} parent=0 // pred_fallthru
    _
  // Predicated region
  $region18: #{cosine_sim_codebook_forward.1} parent=0 // pred_check
    _
  $region19: #{cosine_sim_codebook_forward.1} parent=0 // pred_check_branch
    %791 = sbr.rel (0) target = $region21
  $region20: #{cosine_sim_codebook_forward.1} parent=0 // pred_region
    _
  $region21: #{cosine_sim_codebook_forward.1} parent=0 // pred_fallthru
    _
  // Predicated region
  $region22: #{cosine_sim_codebook_forward.1} parent=0 // pred_check
    _
  $region23: #{cosine_sim_codebook_forward.1} parent=0 // pred_check_branch
    %793 = sbr.rel (0) target = $region25
  $region24: #{cosine_sim_codebook_forward.1} parent=0 // pred_region
    _
  $region25: #{cosine_sim_codebook_forward.1} parent=0 // pred_fallthru
    _

</llo_original>
